<compile_context>
chip_gen: v6e
topology: v6e:2x2x1
jax: 0.10.0
libtpu: 0.0.40
codegen_flags: <defaults>
</compile_context>

<pallas_src>
import functools

import jax
import jax.numpy as jnp
from jax.experimental import pallas as pl
from jax.experimental.pallas import tpu as pltpu


# ----------------------------- Pallas kernel ---------------------------------
def state_critic_kernel(x_ref, wf_ref, bf_ref, w2_ref, b2_ref, w3_ref, b3_ref,
                        out_ref, *, tile_b, seq_len):
    x = x_ref[...]                                                        # (TB*L, Ctot)

    # fused [6x CB_Encoder ; fc1] + relu  (single small matmul)
    h = jnp.dot(x, wf_ref[...], preferred_element_type=jnp.float32) + bf_ref[...]
    h = jnp.maximum(h, 0.0)                                               # (TB*L, 20)

    # fc2 + relu
    h = jnp.dot(h, w2_ref[...], preferred_element_type=jnp.float32) + b2_ref[...]
    h = jnp.maximum(h, 0.0)                                               # (TB*L, 20)

    # .sum(dim=2) commutes with the linear fc3: sum positions first, then fc3 per batch row.
    hs = jnp.sum(h.reshape(tile_b, seq_len, h.shape[-1]), axis=1)         # (TB, 20)
    out_ref[...] = (jnp.dot(hs, w3_ref[...], preferred_element_type=jnp.float32)
                    + b3_ref[...])                                        # (TB, 1)


def _pick_tile_b(batch, seq_len, target_rows=1024):
    """Largest divisor of `batch` with ~target_rows rows per tile and an 8-aligned row count."""
    tb = max(1, min(batch, target_rows // max(seq_len, 1)))
    while tb > 0 and (batch % tb != 0 or (tb != batch and (tb * seq_len) % 8 != 0)):
        tb -= 1
    return batch if tb == 0 else tb


def state_critic_pallas(x_flat, Wf, bf, W2, b2, W3, b3L, *, batch, seq_len):
    n, ctot = x_flat.shape
    assert n == batch * seq_len
    tile_b = _pick_tile_b(batch, seq_len)
    tile_n = tile_b * seq_len
    grid = (batch // tile_b,)

    kernel = functools.partial(state_critic_kernel, tile_b=tile_b, seq_len=seq_len)

    def resident(shape):                       # weights/biases stay pinned in VMEM
        return pl.BlockSpec(shape, lambda i: (0, 0))

    return pl.pallas_call(
        kernel,
        out_shape=jax.ShapeDtypeStruct((batch, 1), jnp.float32),
        grid=grid,
        in_specs=[
            pl.BlockSpec((tile_n, ctot), lambda i: (i, 0)),   # x streamed tile-by-tile
            resident(Wf.shape),
            resident(bf.shape),
            resident(W2.shape),
            resident(b2.shape),
            resident(W3.shape),
            resident(b3L.shape),
        ],
        out_specs=pl.BlockSpec((tile_b, 1), lambda i: (i, 0)),
        compiler_params=pltpu.CompilerParams(
            dimension_semantics=("parallel",),        # megacore / v7x dual-TensorCore sharding
            vmem_limit_bytes=32 * 1024 * 1024,        # explicit, safe on v5e/v6e/v7x
        ),
    )(x_flat, Wf, bf, W2, b2, W3, b3L)


# ----------------------------- parameter setup --------------------------------
def xavier_uniform(key, fan_in, fan_out, shape):
    limit = (6.0 / (fan_in + fan_out)) ** 0.5
    return jax.random.uniform(key, shape, jnp.float32, -limit, limit)


def bias_init(key, fan_in, shape):
    limit = 1.0 / (fan_in ** 0.5)
    return jax.random.uniform(key, shape, jnp.float32, -limit, limit)


def make_params(key, static_size, dynamic_size, hidden_size):
    ks = jax.random.split(key, 20)
    H = hidden_size
    p = {}
    # encoders: stored as (in, out) so the kernel right-multiplies
    p["Ws"] = xavier_uniform(ks[0], static_size, H, (static_size, H))
    p["bs"] = bias_init(ks[1], static_size, (H,))
    for i in range(5):
        p[f"Wd{i}"] = xavier_uniform(ks[2 + 2 * i], dynamic_size, H, (dynamic_size, H))
        p[f"bd{i}"] = bias_init(ks[3 + 2 * i], dynamic_size, (H,))
    # fc layers (1x1 conv), stored as (in, out)
    p["W1"] = xavier_uniform(ks[12], 6 * H, 20, (6 * H, 20))
    p["b1"] = bias_init(ks[13], 6 * H, (20,))
    p["W2"] = xavier_uniform(ks[14], 20, 20, (20, 20))
    p["b2"] = bias_init(ks[15], 20, (20,))
    p["W3"] = xavier_uniform(ks[16], 20, 1, (20, 1))
    p["b3"] = bias_init(ks[17], 20, (1,))
    return p


def fuse_params(p, static_size, dynamic_size, hidden_size, seq_len):
    """Fold the 6 encoders into fc1 (Wf, bf) and the sum-over-L into fc3's bias (b3L)."""
    H = hidden_size
    Ctot = static_size + 5 * dynamic_size
    We = jnp.zeros((Ctot, 6 * H), jnp.float32)
    We = We.at[:static_size, :H].set(p["Ws"])
    for i in range(5):
        r0 = static_size + i * dynamic_size
        c0 = (i + 1) * H
        We = We.at[r0:r0 + dynamic_size, c0:c0 + H].set(p[f"Wd{i}"])
    be = jnp.concatenate([p["bs"]] + [p[f"bd{i}"] for i in range(5)])          # (6H,)
    hi = jax.lax.Precision.HIGHEST
    Wf = jnp.matmul(We, p["W1"], precision=hi)                                 # (Ctot, 20)
    bf = jnp.matmul(be[None, :], p["W1"], precision=hi)[0] + p["b1"]           # (20,)
    b3L = seq_len * p["b3"]                                                    # (1,)
    return Wf, bf[None, :], p["W3"], b3L[None, :]


# ----------------------------- pure-JAX reference ------------------------------
def reference_forward(p, static, d1, d2, d3, d4, d5):
    """Exact replica of the PyTorch forward on NCW inputs (unfused, separate encoders)."""
    hi = jax.lax.Precision.HIGHEST

    def conv1x1(x, W, b):  # x: (B, Cin, L), W: (Cin, Cout), b: (Cout,)
        return jnp.einsum("bcl,co->bol", x, W, precision=hi) + b[None, :, None]

    hs = conv1x1(static, p["Ws"], p["bs"])
    hd = [conv1x1(d, p[f"Wd{i}"], p[f"bd{i}"])
          for i, d in enumerate([d1, d2, d3, d4, d5])]
    hidden = jnp.concatenate([hs] + hd, axis=1)                      # (B, 6H, L)
    o = jax.nn.relu(conv1x1(hidden, p["W1"], p["b1"]))
    o = jax.nn.relu(conv1x1(o, p["W2"], p["b2"]))
    o = conv1x1(o, p["W3"], p["b3"])                                 # (B, 1, L)
    return jnp.sum(o, axis=2)                                        # (B, 1)


# ----------------------------- driver ------------------------------------------
if __name__ == "__main__":
    B, L = 2, 8
    static_size, dynamic_size, hidden_size = 4, 3, 32

    key = jax.random.PRNGKey(0)
    k_in, k_par = jax.random.split(key)
    kins = jax.random.split(k_in, 6)

    # PyTorch-convention NCW inputs
    static = jax.random.normal(kins[0], (B, static_size, L), jnp.float32)
    dyns = [jax.random.normal(kins[1 + i], (B, dynamic_size, L), jnp.float32)
            for i in range(5)]

    params = make_params(k_par, static_size, dynamic_size, hidden_size)
    Wf, bf, W3, b3L = fuse_params(params, static_size, dynamic_size, hidden_size, L)

    # glue: NCW -> channels-last, flatten positions (matches torch.cat channel order)
    x_all = jnp.concatenate([static] + dyns, axis=1)                 # (B, Ctot, L)
    x_flat = jnp.transpose(x_all, (0, 2, 1)).reshape(B * L, -1)      # (N, Ctot)

    out = state_critic_pallas(
        x_flat, Wf, bf,
        params["W2"], params["b2"][None, :],
        W3, b3L,
        batch=B, seq_len=L,
    )
    out = jax.block_until_ready(out)

    ref = reference_forward(params, static, *dyns)
    assert out.shape == (B, 1)
    assert jnp.allclose(out, ref, atol=2e-4, rtol=2e-4), (out, ref)

    print("KERNEL_OK")
</pallas_src>

<mosaic_0001>
module attributes {stable_mosaic.version = 11 : i64} {
  func.func @state_critic_kernel(%arg0: i32, %arg1: memref<16x19xf32, #tpu.memory_space<vmem>>, %arg2: memref<19x20xf32, #tpu.memory_space<vmem>>, %arg3: memref<1x20xf32, #tpu.memory_space<vmem>>, %arg4: memref<20x20xf32, #tpu.memory_space<vmem>>, %arg5: memref<1x20xf32, #tpu.memory_space<vmem>>, %arg6: memref<20x1xf32, #tpu.memory_space<vmem>>, %arg7: memref<1x1xf32, #tpu.memory_space<vmem>>, %arg8: memref<2x1xf32, #tpu.memory_space<vmem>>) attributes {dimension_semantics = [#tpu.dimension_semantics<parallel>], iteration_bounds = array<i64: 1>, scalar_prefetch = 0 : i64, scratch_operands = 0 : i64, tpu.core_type = #tpu.core_type<tc>, window_params = [{transform_indices = @transform_0, window_bounds = array<i64: 16, 19>}, {pipeline_mode = #tpu.pipeline_mode<synchronous>, transform_indices = @transform_1, window_bounds = array<i64: 19, 20>}, {pipeline_mode = #tpu.pipeline_mode<synchronous>, transform_indices = @transform_2, window_bounds = array<i64: 1, 20>}, {pipeline_mode = #tpu.pipeline_mode<synchronous>, transform_indices = @transform_3, window_bounds = array<i64: 20, 20>}, {pipeline_mode = #tpu.pipeline_mode<synchronous>, transform_indices = @transform_4, window_bounds = array<i64: 1, 20>}, {pipeline_mode = #tpu.pipeline_mode<synchronous>, transform_indices = @transform_5, window_bounds = array<i64: 20, 1>}, {pipeline_mode = #tpu.pipeline_mode<synchronous>, transform_indices = @transform_6, window_bounds = array<i64: 1, 1>}, {transform_indices = @transform_7, window_bounds = array<i64: 2, 1>}]} {
    %c0 = arith.constant 0 : index
    %c0_0 = arith.constant 0 : index
    %0 = vector.load %arg1[%c0, %c0_0] : memref<16x19xf32, #tpu.memory_space<vmem>>, vector<16x19xf32>
    %c0_1 = arith.constant 0 : index
    %c0_2 = arith.constant 0 : index
    %1 = vector.load %arg2[%c0_1, %c0_2] : memref<19x20xf32, #tpu.memory_space<vmem>>, vector<19x20xf32>
    %cst = arith.constant dense<0.000000e+00> : vector<16x20xf32>
    %2 = tpu.matmul %0, %1, %cst {dimension_numbers = #tpu.dot_dimension_numbers<[1], [0], [0], [1], [0, 0, 1, 1], [], []>} : vector<16x19xf32>, vector<19x20xf32>, vector<16x20xf32> -> vector<16x20xf32>
    %c0_3 = arith.constant 0 : index
    %c0_4 = arith.constant 0 : index
    %3 = vector.load %arg3[%c0_3, %c0_4] : memref<1x20xf32, #tpu.memory_space<vmem>>, vector<1x20xf32>
    %4 = vector.broadcast %3 : vector<1x20xf32> to vector<16x20xf32>
    %5 = arith.addf %2, %4 : vector<16x20xf32>
    %cst_5 = arith.constant 0.000000e+00 : f32
    %6 = vector.broadcast %cst_5 : f32 to vector<16x20xf32>
    %7 = arith.maximumf %5, %6 : vector<16x20xf32>
    %c0_6 = arith.constant 0 : index
    %c0_7 = arith.constant 0 : index
    %8 = vector.load %arg4[%c0_6, %c0_7] : memref<20x20xf32, #tpu.memory_space<vmem>>, vector<20x20xf32>
    %cst_8 = arith.constant dense<0.000000e+00> : vector<16x20xf32>
    %9 = tpu.matmul %7, %8, %cst_8 {dimension_numbers = #tpu.dot_dimension_numbers<[1], [0], [0], [1], [0, 0, 1, 1], [], []>} : vector<16x20xf32>, vector<20x20xf32>, vector<16x20xf32> -> vector<16x20xf32>
    %c0_9 = arith.constant 0 : index
    %c0_10 = arith.constant 0 : index
    %10 = vector.load %arg5[%c0_9, %c0_10] : memref<1x20xf32, #tpu.memory_space<vmem>>, vector<1x20xf32>
    %11 = vector.broadcast %10 : vector<1x20xf32> to vector<16x20xf32>
    %12 = arith.addf %9, %11 : vector<16x20xf32>
    %cst_11 = arith.constant 0.000000e+00 : f32
    %13 = vector.broadcast %cst_11 : f32 to vector<16x20xf32>
    %14 = arith.maximumf %12, %13 : vector<16x20xf32>
    %15 = vector.shape_cast %14 : vector<16x20xf32> to vector<2x8x20xf32>
    %cst_12 = arith.constant dense<0.000000e+00> : vector<2x20xf32>
    %16 = vector.multi_reduction <add>, %15, %cst_12 [1] : vector<2x8x20xf32> to vector<2x20xf32>
    %c0_13 = arith.constant 0 : index
    %c0_14 = arith.constant 0 : index
    %17 = vector.load %arg6[%c0_13, %c0_14] : memref<20x1xf32, #tpu.memory_space<vmem>>, vector<20x1xf32>
    %cst_15 = arith.constant dense<0.000000e+00> : vector<2x1xf32>
    %18 = tpu.matmul %16, %17, %cst_15 {dimension_numbers = #tpu.dot_dimension_numbers<[1], [0], [0], [1], [0, 0, 1, 1], [], []>} : vector<2x20xf32>, vector<20x1xf32>, vector<2x1xf32> -> vector<2x1xf32>
    %c0_16 = arith.constant 0 : index
    %c0_17 = arith.constant 0 : index
    %19 = vector.load %arg7[%c0_16, %c0_17] : memref<1x1xf32, #tpu.memory_space<vmem>>, vector<1x1xf32>
    %20 = vector.broadcast %19 : vector<1x1xf32> to vector<2x1xf32>
    %21 = arith.addf %18, %20 : vector<2x1xf32>
    %c0_18 = arith.constant 0 : index
    %c0_19 = arith.constant 0 : index
    %22 = vector.load %arg8[%c0_18, %c0_19] : memref<2x1xf32, #tpu.memory_space<vmem>>, vector<2x1xf32>
    tpu.vector_store %arg8[%c0_18, %c0_19], %21 {strides = array<i32>} : memref<2x1xf32, #tpu.memory_space<vmem>>, vector<2x1xf32>,
    return
  }
  func.func @transform_0(%arg0: i32) -> (i32, i32) {
    %c0_i32 = arith.constant 0 : i32
    %c0_i32_0 = arith.constant 0 : i32
    return %arg0, %c0_i32 : i32, i32
  }
  func.func @transform_1(%arg0: i32) -> (i32, i32) {
    %c0_i32 = arith.constant 0 : i32
    %c0_i32_0 = arith.constant 0 : i32
    %c0_i32_1 = arith.constant 0 : i32
    return %c0_i32, %c0_i32_0 : i32, i32
  }
  func.func @transform_2(%arg0: i32) -> (i32, i32) {
    %c0_i32 = arith.constant 0 : i32
    %c0_i32_0 = arith.constant 0 : i32
    %c0_i32_1 = arith.constant 0 : i32
    return %c0_i32, %c0_i32_0 : i32, i32
  }
  func.func @transform_3(%arg0: i32) -> (i32, i32) {
    %c0_i32 = arith.constant 0 : i32
    %c0_i32_0 = arith.constant 0 : i32
    %c0_i32_1 = arith.constant 0 : i32
    return %c0_i32, %c0_i32_0 : i32, i32
  }
  func.func @transform_4(%arg0: i32) -> (i32, i32) {
    %c0_i32 = arith.constant 0 : i32
    %c0_i32_0 = arith.constant 0 : i32
    %c0_i32_1 = arith.constant 0 : i32
    return %c0_i32, %c0_i32_0 : i32, i32
  }
  func.func @transform_5(%arg0: i32) -> (i32, i32) {
    %c0_i32 = arith.constant 0 : i32
    %c0_i32_0 = arith.constant 0 : i32
    %c0_i32_1 = arith.constant 0 : i32
    return %c0_i32, %c0_i32_0 : i32, i32
  }
  func.func @transform_6(%arg0: i32) -> (i32, i32) {
    %c0_i32 = arith.constant 0 : i32
    %c0_i32_0 = arith.constant 0 : i32
    %c0_i32_1 = arith.constant 0 : i32
    return %c0_i32, %c0_i32_0 : i32, i32
  }
  func.func @transform_7(%arg0: i32) -> (i32, i32) {
    %c0_i32 = arith.constant 0 : i32
    %c0_i32_0 = arith.constant 0 : i32
    return %arg0, %c0_i32 : i32, i32
  }
}

</mosaic_0001>

<llo_original>
// kernel: tpu_custom_call.1
$region0: #{tpu_custom_call.1}
  #allocation0 [shape = 'u32[]', space=smem, size = 0x4, offset = 0x4, fixed_abs, tag = 'smem constant byte address 0x4 - core index']
  #allocation1 [shape = 'u32[144,128]{1,0:T(1,128)}', space=vmem, size = 0x12000, scoped, tag = 'internal scratch']
  #allocation2 [shape = 'f32[1,1]{1,0:T(1,128)S(1)}', space=vmem, size = 0x200, scoped, tag = 'scoped memory for tpu_custom_call.1']
  %s0 = inlined_call_operand.hbm [shape: f32[16,19], index: 0, kind: input, shape index: {}]
  %s1 = inlined_call_operand.vmem [shape: f32[19,20], index: 1, kind: input, shape index: {}]
  %s2 = inlined_call_operand.vmem [shape: f32[1,20], index: 2, kind: input, shape index: {}]
  %s3 = inlined_call_operand.hbm [shape: f32[20,20], index: 3, kind: input, shape index: {}]
  %s4 = inlined_call_operand.vmem [shape: f32[1,20], index: 4, kind: input, shape index: {}]
  %s5 = inlined_call_operand.vmem [shape: f32[20,1], index: 5, kind: input, shape index: {}]
  %s6 = inlined_call_operand.<no memory space> [shape: f32[1,1], index: 6, kind: input, shape index: {}]
  %s7 = inlined_call_operand.vmem [shape: f32[2,1], index: 7, kind: output, shape index: {}]
  %s8 = sld [smem:[#allocation0]]
  $region46: #{tpu_custom_call.1} parent=0
    _
  %s10 = ssub.s32 1, %s8
  %s11 = scalar_select 0, %s10, %s8
  %v12 = vstv %s6
  %13 = vst [vmem:[#allocation2] sm:$0x1] %v12
  $region1: #{tpu_custom_call.1} parent=0
    #allocation3 [shape = 'u8[8192]{0}', space=vmem, size = 0x2000, scoped, tag = 'input window, operand 0, single buffered']
    #allocation4 [shape = 's32[1]{0}', space=sflag, size = 0x4, scoped, tag = 'scoped memory for tpu_custom_call.1']
    #allocation5 [shape = 'u8[12288]{0}', space=vmem, size = 0x3000, scoped, tag = 'input window, operand 3, single buffered']
    #allocation6 [shape = 's32[1]{0}', space=sflag, size = 0x4, scoped, tag = 'scoped memory for tpu_custom_call.1']
    %14 = vsyncpa [#allocation4], 0
    %15 = vsyncpa [#allocation6], 0
    // Predicated region
    $region2: #{tpu_custom_call.1} parent=1 // pred_check
      _
    $region3: #{tpu_custom_call.1} parent=1 // pred_check_branch
      %17 = sbr.rel (0) target = $region5
    $region4: #{tpu_custom_call.1} parent=1 // pred_region
      %s19 = ssub.s32 256, 256
      %20 = vsyncadd [#allocation4], %s19
      %s21 = sshll.u32 [#allocation3], 4
      %s22 = int_to_ptr.vmem [resolvable:$true] %s21
      %27 = dma.hbm_to_vmem [thread:$0]  %s0, 256, %s22, [#allocation4], 128, 128, 8
    $region5: #{tpu_custom_call.1} parent=1 // pred_fallthru
      _
    // Predicated region
    $region6: #{tpu_custom_call.1} parent=1 // pred_check
      _
    $region7: #{tpu_custom_call.1} parent=1 // pred_check_branch
      %29 = sbr.rel (0) target = $region9
    $region8: #{tpu_custom_call.1} parent=1 // pred_region
      _
    $region9: #{tpu_custom_call.1} parent=1 // pred_fallthru
      _
    // Predicated region
    $region10: #{tpu_custom_call.1} parent=1 // pred_check
      _
    $region11: #{tpu_custom_call.1} parent=1 // pred_check_branch
      %31 = sbr.rel (0) target = $region13
    $region12: #{tpu_custom_call.1} parent=1 // pred_region
      _
    $region13: #{tpu_custom_call.1} parent=1 // pred_fallthru
      _
    // Predicated region
    $region14: #{tpu_custom_call.1} parent=1 // pred_check
      _
    $region15: #{tpu_custom_call.1} parent=1 // pred_check_branch
      %33 = sbr.rel (0) target = $region17
    $region16: #{tpu_custom_call.1} parent=1 // pred_region
      %s35 = ssub.s32 384, 384
      %36 = vsyncadd [#allocation6], %s35
      %s37 = sshll.u32 [#allocation5], 4
      %s38 = int_to_ptr.vmem [resolvable:$true] %s37
      %43 = dma.hbm_to_vmem [thread:$0]  %s3, 384, %s38, [#allocation6], 128, 128, 8
    $region17: #{tpu_custom_call.1} parent=1 // pred_fallthru
      _
    // Predicated region
    $region18: #{tpu_custom_call.1} parent=1 // pred_check
      _
    $region19: #{tpu_custom_call.1} parent=1 // pred_check_branch
      %45 = sbr.rel (0) target = $region21
    $region20: #{tpu_custom_call.1} parent=1 // pred_region
      _
    $region21: #{tpu_custom_call.1} parent=1 // pred_fallthru
      _
    // Predicated region
    $region22: #{tpu_custom_call.1} parent=1 // pred_check
      _
    $region23: #{tpu_custom_call.1} parent=1 // pred_check_branch
      %47 = sbr.rel (0) target = $region25
    $region24: #{tpu_custom_call.1} parent=1 // pred_region
      _
    $region25: #{tpu_custom_call.1} parent=1 // pred_fallthru
      _
    // Predicated region
    $region26: #{tpu_custom_call.1} parent=1 // pred_check
      _
    $region27: #{tpu_custom_call.1} parent=1 // pred_check_branch
      %49 = sbr.rel (0) target = $region29
    $region28: #{tpu_custom_call.1} parent=1 // pred_region
      _
    $region29: #{tpu_custom_call.1} parent=1 // pred_fallthru
      _
    // Predicated region
    $region30: #{tpu_custom_call.1} parent=1 // pred_check
      _
    $region31: #{tpu_custom_call.1} parent=1 // pred_check_branch
      %51 = sbr.rel (0) target = $region33
    $region32: #{tpu_custom_call.1} parent=1 // pred_region
      %52 = dma.done [#allocation4], 256
    $region33: #{tpu_custom_call.1} parent=1 // pred_fallthru
      _
    // Predicated region
    $region34: #{tpu_custom_call.1} parent=1 // pred_check
      _
    $region35: #{tpu_custom_call.1} parent=1 // pred_check_branch
      %54 = sbr.rel (0) target = $region37
    $region36: #{tpu_custom_call.1} parent=1 // pred_region
      %55 = dma.done [#allocation6], 384
    $region37: #{tpu_custom_call.1} parent=1 // pred_fallthru
      _
    %v56 = vld [vmem:[#allocation3] sm:$0xff]
    %v57 = vld [vmem:[#allocation3 + $0x8] sm:$0xff]
    %v58 = vld [vmem:[%s1] sm:$0xff]
    %v59 = vld [vmem:[%s1 + $0x8] sm:$0xff]
    %v60 = vld [vmem:[%s1 + $0x10] sm:$0x7]
    %v61 = vld [vmem:[%s2] sm:$0x1]
    %v63 = vlaneseq
    %v64 = vshrl.u32 %v63, 7
    %v65 = vsub.s32 0, %v64
    %v66 = vrot.slane %v61, %v65
    %vm68 = vcmask 154624
    %v70 = vsel %vm68, %v56, 0
    %v73 = vsel %vm68, %v57, 0
    %vm75 = vcmask 1042432
    %v77 = vsel %vm75, %v60, 0
    %79 = vmatprep.subr.mxu0 0.0
    %80 = vmatpush1.msra.mxu0 0.0
    %81 = vmatprep.subr.mxu0 0.0
    %82 = vmatpush1.msra.mxu0 0.0
    %83 = vmatprep.subr.mxu0 0.0
    %84 = vmatpush1.msra.mxu0 0.0
    %85 = vmatprep.subr.mxu0 0.0
    %86 = vmatpush1.msra.mxu0 0.0
    %87 = vmatprep.subr.mxu0 0.0
    %88 = vmatpush1.msra.mxu0 0.0
    %89 = vmatprep.subr.mxu0 0.0
    %90 = vmatpush1.msra.mxu0 0.0
    %91 = vmatprep.subr.mxu0 0.0
    %92 = vmatpush1.msra.mxu0 0.0
    %93 = vmatprep.subr.mxu0 0.0
    %94 = vmatpush1.msra.mxu0 0.0
    %95 = vmatprep.subr.mxu0 0.0
    %96 = vmatpush1.msra.mxu0 0.0
    %97 = vmatprep.subr.mxu0 0.0
    %98 = vmatpush1.msra.mxu0 0.0
    %99 = vmatprep.subr.mxu0 0.0
    %100 = vmatpush1.msra.mxu0 0.0
    %101 = vmatprep.subr.mxu0 0.0
    %102 = vmatpush1.msra.mxu0 0.0
    %103 = vmatprep.subr.mxu0 0.0
    %104 = vmatpush1.msra.mxu0 0.0
    %105 = vmatprep.subr.mxu0 0.0
    %106 = vmatpush1.msra.mxu0 %v77
    %107 = vmatprep.subr.mxu0 0.0
    %108 = vmatpush1.msra.mxu0 %v59
    %109 = vmatprep.subr.mxu0 0.0
    %110 = vmatpush1.msra.mxu0 %v58
    %111 = vmatprep.subr.mxu0 0.0
    %112 = vmatpush2.msra.mxu0 0.0
    %113 = vmatprep.subr.mxu0 0.0
    %114 = vmatpush2.msra.mxu0 0.0
    %115 = vmatprep.subr.mxu0 0.0
    %116 = vmatpush2.msra.mxu0 0.0
    %117 = vmatprep.subr.mxu0 0.0
    %118 = vmatpush2.msra.mxu0 0.0
    %119 = vmatprep.subr.mxu0 0.0
    %120 = vmatpush2.msra.mxu0 0.0
    %121 = vmatprep.subr.mxu0 0.0
    %122 = vmatpush2.msra.mxu0 0.0
    %123 = vmatprep.subr.mxu0 0.0
    %124 = vmatpush2.msra.mxu0 0.0
    %125 = vmatprep.subr.mxu0 0.0
    %126 = vmatpush2.msra.mxu0 0.0
    %127 = vmatprep.subr.mxu0 0.0
    %128 = vmatpush2.msra.mxu0 0.0
    %129 = vmatprep.subr.mxu0 0.0
    %130 = vmatpush2.msra.mxu0 0.0
    %131 = vmatprep.subr.mxu0 0.0
    %132 = vmatpush2.msra.mxu0 0.0
    %133 = vmatprep.subr.mxu0 0.0
    %134 = vmatpush2.msra.mxu0 0.0
    %135 = vmatprep.subr.mxu0 0.0
    %136 = vmatpush2.msra.mxu0 0.0
    %137 = vmatprep.subr.mxu0 0.0
    %138 = vmatpush2.msra.mxu0 0.0
    %139 = vmatprep.subr.mxu0 0.0
    %140 = vmatpush2.msra.mxu0 0.0
    %141 = vmatprep.subr.mxu0 0.0
    %142 = vmatpush2.msra.mxu0 0.0
    %143 = vmatprep.mubr.f32.mxu0 0.0
    %144 = vmatmul.mubr.f32.gmra.mxu0 %v70
    %v145 = vpop.f32.mrf.mxu0
    %v146 = vadd.f32 %v66, %v145
    %v147 = vpop.f32.mrf.mxu0
    %148 = vmatprep.mubr.f32.mxu0 0.0
    %149 = vmatmul.mubr.f32.gmra.mxu0 %v73
    %v150 = vpop.f32.mrf.mxu0
    %v151 = vadd.f32 %v66, %v150
    %v152 = vpop.f32.mrf.mxu0
    %153 = vdwg.mxu0
    %v154 = vmax.f32 %v146, 0.0
    %v155 = vmax.f32 %v151, 0.0
    %v156 = vld [vmem:[#allocation5] sm:$0xff]
    %v157 = vld [vmem:[#allocation5 + $0x8] sm:$0xff]
    %v158 = vld [vmem:[#allocation5 + $0x10] sm:$0xf]
    %v159 = vld [vmem:[%s4] sm:$0x1]
    %v161 = vlaneseq
    %v162 = vshrl.u32 %v161, 7
    %v163 = vsub.s32 0, %v162
    %v164 = vrot.slane %v159, %v163
    %vm166 = vcmask 162816
    %v168 = vsel %vm166, %v154, 0
    %v171 = vsel %vm166, %v155, 0
    %vm173 = vcmask 1043456
    %v175 = vsel %vm173, %v158, 0
    %177 = vmatprep.subr.mxu0 0.0
    %178 = vmatpush1.msra.mxu0 0.0
    %179 = vmatprep.subr.mxu0 0.0
    %180 = vmatpush1.msra.mxu0 0.0
    %181 = vmatprep.subr.mxu0 0.0
    %182 = vmatpush1.msra.mxu0 0.0
    %183 = vmatprep.subr.mxu0 0.0
    %184 = vmatpush1.msra.mxu0 0.0
    %185 = vmatprep.subr.mxu0 0.0
    %186 = vmatpush1.msra.mxu0 0.0
    %187 = vmatprep.subr.mxu0 0.0
    %188 = vmatpush1.msra.mxu0 0.0
    %189 = vmatprep.subr.mxu0 0.0
    %190 = vmatpush1.msra.mxu0 0.0
    %191 = vmatprep.subr.mxu0 0.0
    %192 = vmatpush1.msra.mxu0 0.0
    %193 = vmatprep.subr.mxu0 0.0
    %194 = vmatpush1.msra.mxu0 0.0
    %195 = vmatprep.subr.mxu0 0.0
    %196 = vmatpush1.msra.mxu0 0.0
    %197 = vmatprep.subr.mxu0 0.0
    %198 = vmatpush1.msra.mxu0 0.0
    %199 = vmatprep.subr.mxu0 0.0
    %200 = vmatpush1.msra.mxu0 0.0
    %201 = vmatprep.subr.mxu0 0.0
    %202 = vmatpush1.msra.mxu0 0.0
    %203 = vmatprep.subr.mxu0 0.0
    %204 = vmatpush1.msra.mxu0 %v175
    %205 = vmatprep.subr.mxu0 0.0
    %206 = vmatpush1.msra.mxu0 %v157
    %207 = vmatprep.subr.mxu0 0.0
    %208 = vmatpush1.msra.mxu0 %v156
    %209 = vmatprep.subr.mxu0 0.0
    %210 = vmatpush2.msra.mxu0 0.0
    %211 = vmatprep.subr.mxu0 0.0
    %212 = vmatpush2.msra.mxu0 0.0
    %213 = vmatprep.subr.mxu0 0.0
    %214 = vmatpush2.msra.mxu0 0.0
    %215 = vmatprep.subr.mxu0 0.0
    %216 = vmatpush2.msra.mxu0 0.0
    %217 = vmatprep.subr.mxu0 0.0
    %218 = vmatpush2.msra.mxu0 0.0
    %219 = vmatprep.subr.mxu0 0.0
    %220 = vmatpush2.msra.mxu0 0.0
    %221 = vmatprep.subr.mxu0 0.0
    %222 = vmatpush2.msra.mxu0 0.0
    %223 = vmatprep.subr.mxu0 0.0
    %224 = vmatpush2.msra.mxu0 0.0
    %225 = vmatprep.subr.mxu0 0.0
    %226 = vmatpush2.msra.mxu0 0.0
    %227 = vmatprep.subr.mxu0 0.0
    %228 = vmatpush2.msra.mxu0 0.0
    %229 = vmatprep.subr.mxu0 0.0
    %230 = vmatpush2.msra.mxu0 0.0
    %231 = vmatprep.subr.mxu0 0.0
    %232 = vmatpush2.msra.mxu0 0.0
    %233 = vmatprep.subr.mxu0 0.0
    %234 = vmatpush2.msra.mxu0 0.0
    %235 = vmatprep.subr.mxu0 0.0
    %236 = vmatpush2.msra.mxu0 0.0
    %237 = vmatprep.subr.mxu0 0.0
    %238 = vmatpush2.msra.mxu0 0.0
    %239 = vmatprep.subr.mxu0 0.0
    %240 = vmatpush2.msra.mxu0 0.0
    %241 = vmatprep.mubr.f32.mxu0 0.0
    %242 = vmatmul.mubr.f32.gmra.mxu0 %v168
    %v243 = vpop.f32.mrf.mxu0
    %v244 = vadd.f32 %v164, %v243
    %v245 = vpop.f32.mrf.mxu0
    %246 = vmatprep.mubr.f32.mxu0 0.0
    %247 = vmatmul.mubr.f32.gmra.mxu0 %v171
    %v248 = vpop.f32.mrf.mxu0
    %v249 = vadd.f32 %v164, %v248
    %v250 = vpop.f32.mrf.mxu0
    %251 = vdwg.mxu0
    %v252 = vmax.f32 %v244, 0.0
    %v253 = vmax.f32 %v249, 0.0
    %v254 = vsel %vm166, %v252, 0.0
    %v255 = vrot.slane %v254, 4
    %v256 = vadd.f32 %v254, %v255
    %v257 = vrot.slane %v256, 2
    %v258 = vadd.f32 %v256, %v257
    %v259 = vrot.slane %v258, 1
    %v260 = vadd.f32 %v258, %v259
    %v261 = vsel %vm166, %v253, 0.0
    %v262 = vrot.slane %v261, 4
    %v263 = vadd.f32 %v261, %v262
    %v264 = vrot.slane %v263, 2
    %v265 = vadd.f32 %v263, %v264
    %v266 = vrot.slane %v265, 1
    %v267 = vadd.f32 %v265, %v266
    %v268 = vld [vmem:[%s5] sm:$0xff]
    %v269 = vld [vmem:[%s5 + $0x8] sm:$0xff]
    %v270 = vld [vmem:[%s5 + $0x10] sm:$0xf]
    %v271 = vld [vmem:[#allocation2] sm:$0x1]
    %v273 = vlaneseq
    %v274 = vshrl.u32 %v273, 7
    %v275 = vsub.s32 0, %v274
    %v276 = vrot.slane %v271, %v275
    %vm280 = vcmask 1041409
    %v281 = vsel %vm280, %v267, %v260
    %v282 = vsel %vm166, %v281, 0
    %v285 = vsel %vm173, %v270, 0
    %287 = vmatprep.subr.mxu0 0.0
    %288 = vmatpush1.msra.mxu0 0.0
    %289 = vmatprep.subr.mxu0 0.0
    %290 = vmatpush1.msra.mxu0 0.0
    %291 = vmatprep.subr.mxu0 0.0
    %292 = vmatpush1.msra.mxu0 0.0
    %293 = vmatprep.subr.mxu0 0.0
    %294 = vmatpush1.msra.mxu0 0.0
    %295 = vmatprep.subr.mxu0 0.0
    %296 = vmatpush1.msra.mxu0 0.0
    %297 = vmatprep.subr.mxu0 0.0
    %298 = vmatpush1.msra.mxu0 0.0
    %299 = vmatprep.subr.mxu0 0.0
    %300 = vmatpush1.msra.mxu0 0.0
    %301 = vmatprep.subr.mxu0 0.0
    %302 = vmatpush1.msra.mxu0 0.0
    %303 = vmatprep.subr.mxu0 0.0
    %304 = vmatpush1.msra.mxu0 0.0
    %305 = vmatprep.subr.mxu0 0.0
    %306 = vmatpush1.msra.mxu0 0.0
    %307 = vmatprep.subr.mxu0 0.0
    %308 = vmatpush1.msra.mxu0 0.0
    %309 = vmatprep.subr.mxu0 0.0
    %310 = vmatpush1.msra.mxu0 0.0
    %311 = vmatprep.subr.mxu0 0.0
    %312 = vmatpush1.msra.mxu0 0.0
    %313 = vmatprep.subr.mxu0 0.0
    %314 = vmatpush1.msra.mxu0 %v285
    %315 = vmatprep.subr.mxu0 0.0
    %316 = vmatpush1.msra.mxu0 %v269
    %317 = vmatprep.subr.mxu0 0.0
    %318 = vmatpush1.msra.mxu0 %v268
    %319 = vmatprep.subr.mxu0 0.0
    %320 = vmatpush2.msra.mxu0 0.0
    %321 = vmatprep.subr.mxu0 0.0
    %322 = vmatpush2.msra.mxu0 0.0
    %323 = vmatprep.subr.mxu0 0.0
    %324 = vmatpush2.msra.mxu0 0.0
    %325 = vmatprep.subr.mxu0 0.0
    %326 = vmatpush2.msra.mxu0 0.0
    %327 = vmatprep.subr.mxu0 0.0
    %328 = vmatpush2.msra.mxu0 0.0
    %329 = vmatprep.subr.mxu0 0.0
    %330 = vmatpush2.msra.mxu0 0.0
    %331 = vmatprep.subr.mxu0 0.0
    %332 = vmatpush2.msra.mxu0 0.0
    %333 = vmatprep.subr.mxu0 0.0
    %334 = vmatpush2.msra.mxu0 0.0
    %335 = vmatprep.subr.mxu0 0.0
    %336 = vmatpush2.msra.mxu0 0.0
    %337 = vmatprep.subr.mxu0 0.0
    %338 = vmatpush2.msra.mxu0 0.0
    %339 = vmatprep.subr.mxu0 0.0
    %340 = vmatpush2.msra.mxu0 0.0
    %341 = vmatprep.subr.mxu0 0.0
    %342 = vmatpush2.msra.mxu0 0.0
    %343 = vmatprep.subr.mxu0 0.0
    %344 = vmatpush2.msra.mxu0 0.0
    %345 = vmatprep.subr.mxu0 0.0
    %346 = vmatpush2.msra.mxu0 0.0
    %347 = vmatprep.subr.mxu0 0.0
    %348 = vmatpush2.msra.mxu0 0.0
    %349 = vmatprep.subr.mxu0 0.0
    %350 = vmatpush2.msra.mxu0 0.0
    %351 = vmatprep.mubr.f32.mxu0 0.0
    %352 = vmatmul.mubr.f32.gmra.mxu0 %v282
    %v353 = vpop.f32.mrf.mxu0
    %v354 = vadd.f32 %v276, %v353
    %v355 = vpop.f32.mrf.mxu0
    %356 = vdwg.mxu0
    %vm357 = vcmask 1024
    %358 = vst.msk [vmem:[%s7] sm:$0x3] %vm357, %v354
    // Predicated region
    $region38: #{tpu_custom_call.1} parent=1 // pred_check
      _
    $region39: #{tpu_custom_call.1} parent=1 // pred_check_branch
      %360 = sbr.rel (0) target = $region41
    $region40: #{tpu_custom_call.1} parent=1 // pred_region
      _
    $region41: #{tpu_custom_call.1} parent=1 // pred_fallthru
      _
    // Predicated region
    $region42: #{tpu_custom_call.1} parent=1 // pred_check
      _
    $region43: #{tpu_custom_call.1} parent=1 // pred_check_branch
      %362 = sbr.rel (0) target = $region45
    $region44: #{tpu_custom_call.1} parent=1 // pred_region
      _
    $region45: #{tpu_custom_call.1} parent=1 // pred_fallthru
      _
    %363 = vsyncpa [#allocation4], 1
    %364 = vsyncpa [#allocation6], 1

</llo_original>
